<compile_context>
chip_gen: v7x
topology: tpu7x:2x2x1
jax: 0.10.0
libtpu: 0.0.40
codegen_flags: <defaults>
</compile_context>

<pallas_src>
import functools
import math

import jax
import jax.numpy as jnp
from jax.experimental import pallas as pl
from jax.experimental.pallas import tpu as pltpu


def _round_up(x, m):
    return (x + m - 1) // m * m


def trigger_word_kernel(H, Lp, conv_ref, w_ref, b_ref, out_ref):
    """Fused 2-layer GRU cell (h0 == 0, seq_len == 1) + dense + sigmoid.

    conv_ref : [8, Lp]        bf16  Conv1d output (lanes >= L are zero)
    w_ref    : [Lp + 2H, Wg]  bf16  rows 0:Lp     -> wi1  [L, 3H]  (r|z|n, pre-transposed)
                                    rows Lp:Lp+H  -> wi2  [H, 3H]
                                    rows Lp+H:+2H -> Wd   [H, O]   (lanes >= O zero)
    b_ref    : [8, Wg]        f32   row0 b1 (b_i+b_h fused, r|z|n), row1 b2,
                                    row2 b_hn1, row3 b_hn2, row4 bd
    out_ref  : [8, Wg]        f32   sigmoid(dense); lanes >= O are sigmoid(0)=0.5,
                                    sliced off in the wrapper.
    """
    # ---- layer-1 GRU gates: one fused bf16 MXU matmul, f32 accumulation ----
    g1 = jnp.dot(conv_ref[...], w_ref[0:Lp, :], preferred_element_type=jnp.float32)
    g1 = g1 + b_ref[0:1, :]                      # full-lane-tile, unmasked add
    r1 = jax.nn.sigmoid(g1[:, :H])
    z1 = jax.nn.sigmoid(g1[:, H:2 * H])
    n1 = jnp.tanh(g1[:, 2 * H:3 * H] + r1 * b_ref[2:3, :H])
    h1 = ((1.0 - z1) * n1).astype(jnp.bfloat16)  # + z1*h0, with h0 == 0

    # TODO(synk): inter-layer GRU dropout (p=0.8) is training-only; eval semantics here.

    # ---- layer-2 GRU (h0 == 0) ----
    g2 = jnp.dot(h1, w_ref[Lp:Lp + H, :], preferred_element_type=jnp.float32)
    g2 = g2 + b_ref[1:2, :]
    r2 = jax.nn.sigmoid(g2[:, :H])
    z2 = jax.nn.sigmoid(g2[:, H:2 * H])
    n2 = jnp.tanh(g2[:, 2 * H:3 * H] + r2 * b_ref[3:4, :H])
    h2 = ((1.0 - z2) * n2).astype(jnp.bfloat16)

    # ---- Dense + Sigmoid, lane-dense (unmasked) output store ----
    logits = jnp.dot(h2, w_ref[Lp + H:Lp + 2 * H, :], preferred_element_type=jnp.float32)
    out_ref[...] = jax.nn.sigmoid(logits + b_ref[4:5, :])


def pack_params(params):
    """Host-side fusion / transposition / packing of the GRU + Dense parameters."""
    H = params["w_hr1"].shape[0]
    L = params["w_ir1"].shape[1]          # GRU input_size == Conv_outsize
    O = params["wd"].shape[0]
    Lp = _round_up(L, 128)
    Wg = _round_up(max(3 * H, O), 128)

    # pre-transposed gate weights, PyTorch gate order (r, z, n)
    wi1 = jnp.concatenate([params["w_ir1"], params["w_iz1"], params["w_in1"]], axis=0).T
    wi2 = jnp.concatenate([params["w_ir2"], params["w_iz2"], params["w_in2"]], axis=0).T

    # one bf16 weight slab (wi1 | wi2 | Wd), lane-padded to Wg
    wslab = jnp.zeros((Lp + 2 * H, Wg), jnp.float32)
    wslab = wslab.at[:L, :3 * H].set(wi1)
    wslab = wslab.at[Lp:Lp + H, :3 * H].set(wi2)
    wslab = wslab.at[Lp + H:Lp + 2 * H, :O].set(params["wd"].T)
    wslab = wslab.astype(jnp.bfloat16)
    # TODO(synk): on v7x the slab could be stored fp8 (native fp8 MXU) for another 2x DMA cut.

    # fused biases: (b_i + b_h) for r/z, b_i for n; b_hn kept separate (scaled by r).
    b1 = jnp.concatenate([params["b_ir1"] + params["b_hr1"],
                          params["b_iz1"] + params["b_hz1"],
                          params["b_in1"]], axis=1)[0]
    b2 = jnp.concatenate([params["b_ir2"] + params["b_hr2"],
                          params["b_iz2"] + params["b_hz2"],
                          params["b_in2"]], axis=1)[0]
    bslab = jnp.zeros((8, Wg), jnp.float32)
    bslab = bslab.at[0, :3 * H].set(b1)
    bslab = bslab.at[1, :3 * H].set(b2)
    bslab = bslab.at[2, :H].set(params["b_hn1"][0])
    bslab = bslab.at[3, :H].set(params["b_hn2"][0])
    bslab = bslab.at[4, :O].set(params["bd"][0])
    return wslab, bslab, dict(H=H, L=L, Lp=Lp, O=O, Wg=Wg)


def trigger_word_forward(x, params, *, kernel_size=15, stride=4):
    B, F, T = x.shape
    wslab, bslab, d = pack_params(params)
    H, L, Lp, O, Wg = (d[k] for k in ("H", "L", "Lp", "O", "Wg"))
    assert L == (T - kernel_size) // stride + 1

    # Conv1d (out_channels=1) in the wrapper: one small einsum over im2col patches.
    patches = jnp.stack(
        [x[:, :, l * stride:l * stride + kernel_size] for l in range(L)], axis=1
    )                                                               # [B, L, F, K]
    conv = jnp.einsum("blfk,fk->bl", patches, params["cw"],
                      precision=jax.lax.Precision.HIGHEST) + params["cb"][0, 0]

    Bp = _round_up(max(B, 8), 8)
    conv = jnp.pad(conv, ((0, Bp - B), (0, Lp - L))).astype(jnp.bfloat16)

    nb = Bp // 8
    flops = 2 * Bp * (Lp * Wg + 2 * H * Wg)
    transcendentals = Bp * (6 * H + Wg)
    bytes_accessed = (Bp * Lp * 2 + (Lp + 2 * H) * Wg * 2 + 8 * Wg * 4 + Bp * Wg * 4)

    kern = functools.partial(trigger_word_kernel, H, Lp)
    out = pl.pallas_call(
        kern,
        out_shape=jax.ShapeDtypeStruct((Bp, Wg), jnp.float32),
        grid=(nb,),
        in_specs=[
            pl.BlockSpec((8, Lp), lambda i: (i, 0)),              # per-batch-tile
            pl.BlockSpec((Lp + 2 * H, Wg), lambda i: (0, 0)),     # weights: VMEM-resident
            pl.BlockSpec((8, Wg), lambda i: (0, 0)),              # biases:  VMEM-resident
        ],
        out_specs=pl.BlockSpec((8, Wg), lambda i: (i, 0)),
        compiler_params=pltpu.CompilerParams(dimension_semantics=("parallel",)),
        cost_estimate=pl.CostEstimate(flops=flops,
                                      transcendentals=transcendentals,
                                      bytes_accessed=bytes_accessed),
    )(conv, wslab, bslab)
    return out[:B, :O]


def init_params(key, input_freq, conv_out_len, hidden, output, kernel_size):
    keys = iter(jax.random.split(key, 64))

    def uni(shape, bound):
        return jax.random.uniform(next(keys), shape, jnp.float32, -bound, bound)

    p = {}
    cbound = 1.0 / math.sqrt(input_freq * kernel_size)
    p["cw"] = uni((input_freq, kernel_size), cbound)
    p["cb"] = uni((1, 1), cbound)
    gbound = 1.0 / math.sqrt(hidden)
    for layer, in_dim in ((1, conv_out_len), (2, hidden)):
        for g in "rzn":
            p[f"w_i{g}{layer}"] = uni((hidden, in_dim), gbound)
            p[f"w_h{g}{layer}"] = uni((hidden, hidden), gbound)
            p[f"b_i{g}{layer}"] = uni((1, hidden), gbound)
            p[f"b_h{g}{layer}"] = uni((1, hidden), gbound)
    dbound = 1.0 / math.sqrt(hidden)
    p["wd"] = uni((output, hidden), dbound)
    p["bd"] = uni((1, output), dbound)
    return p


def reference_forward(x, p, *, kernel_size=15, stride=4):
    """Plain-JAX mirror of the PyTorch forward (eval mode), for verification."""
    B, F, T = x.shape
    L = (T - kernel_size) // stride + 1
    cols = [jnp.sum(x[:, :, l * stride: l * stride + kernel_size] * p["cw"][None],
                    axis=(1, 2)) for l in range(L)]
    conv = jnp.stack(cols, axis=1) + p["cb"][0, 0]

    def cell(xv, h, layer):
        g = lambda name: p[f"{name}{layer}"]
        r = jax.nn.sigmoid(xv @ g("w_ir").T + g("b_ir") + h @ g("w_hr").T + g("b_hr"))
        z = jax.nn.sigmoid(xv @ g("w_iz").T + g("b_iz") + h @ g("w_hz").T + g("b_hz"))
        n = jnp.tanh(xv @ g("w_in").T + g("b_in") + r * (h @ g("w_hn").T + g("b_hn")))
        return (1.0 - z) * n + z * h

    H = p["w_hr1"].shape[0]
    h0 = jnp.zeros((B, H), jnp.float32)
    h1 = cell(conv, h0, 1)
    h2 = cell(h1, h0, 2)
    return jax.nn.sigmoid(h2 @ p["wd"].T + p["bd"])


if __name__ == "__main__":
    # Small shapes consistent with the module.
    B = 2
    input_freq = 8          # Conv1d in_channels
    input_time = 79         # -> Conv_outsize = (79 - 15)//4 + 1 = 17 (GRU input_size)
    hidden_time = 32        # GRU hidden size
    output_time = 16        # Dense out_features
    kernel_size, stride = 15, 4
    conv_out_len = (input_time - kernel_size) // stride + 1

    key = jax.random.PRNGKey(0)
    kx, kp = jax.random.split(key)
    x = jax.random.normal(kx, (B, input_freq, input_time), jnp.float32)
    params = init_params(kp, input_freq, conv_out_len, hidden_time, output_time,
                         kernel_size)

    out = trigger_word_forward(x, params, kernel_size=kernel_size, stride=stride)
    out = jax.block_until_ready(out)

    ref = reference_forward(x, params, kernel_size=kernel_size, stride=stride)
    assert out.shape == (B, output_time), out.shape
    assert jnp.allclose(out, ref, rtol=1e-2, atol=1e-2), (
        float(jnp.max(jnp.abs(out - ref))))

    print("KERNEL_OK")
</pallas_src>

<mosaic_0001>
module attributes {stable_mosaic.version = 11 : i64} {
  func.func @trigger_word_kernel(%arg0: i32, %arg1: memref<8x128xbf16, #tpu.memory_space<vmem>>, %arg2: memref<192x128xbf16, #tpu.memory_space<vmem>>, %arg3: memref<8x128xf32, #tpu.memory_space<vmem>>, %arg4: memref<8x128xf32, #tpu.memory_space<vmem>>) attributes {dimension_semantics = [#tpu.dimension_semantics<parallel>], iteration_bounds = array<i64: 1>, scalar_prefetch = 0 : i64, scratch_operands = 0 : i64, tpu.core_type = #tpu.core_type<tc>, window_params = [{transform_indices = @transform_0, window_bounds = array<i64: 8, 128>}, {pipeline_mode = #tpu.pipeline_mode<synchronous>, transform_indices = @transform_1, window_bounds = array<i64: 192, 128>}, {pipeline_mode = #tpu.pipeline_mode<synchronous>, transform_indices = @transform_2, window_bounds = array<i64: 8, 128>}, {transform_indices = @transform_3, window_bounds = array<i64: 8, 128>}]} {
    %c0 = arith.constant 0 : index
    %c0_0 = arith.constant 0 : index
    %0 = vector.load %arg1[%c0, %c0_0] : memref<8x128xbf16, #tpu.memory_space<vmem>>, vector<8x128xbf16>
    %c0_1 = arith.constant 0 : index
    %c0_2 = arith.constant 0 : index
    %1 = vector.load %arg2[%c0_1, %c0_2] : memref<192x128xbf16, #tpu.memory_space<vmem>>, vector<128x128xbf16>
    %cst = arith.constant dense<0.000000e+00> : vector<8x128xf32>
    %2 = tpu.matmul %0, %1, %cst {dimension_numbers = #tpu.dot_dimension_numbers<[1], [0], [0], [1], [0, 0, 1, 1], [], []>} : vector<8x128xbf16>, vector<128x128xbf16>, vector<8x128xf32> -> vector<8x128xf32>
    %c0_3 = arith.constant 0 : index
    %c0_4 = arith.constant 0 : index
    %3 = vector.load %arg3[%c0_3, %c0_4] : memref<8x128xf32, #tpu.memory_space<vmem>>, vector<1x128xf32>
    %4 = vector.broadcast %3 : vector<1x128xf32> to vector<8x128xf32>
    %5 = arith.addf %2, %4 : vector<8x128xf32>
    %6 = vector.extract_strided_slice %5 {offsets = [0, 0], sizes = [8, 32], strides = [1, 1]} : vector<8x128xf32> to vector<8x32xf32>
    %7 = arith.negf %6 : vector<8x32xf32>
    %8 = math.exp %7 : vector<8x32xf32>
    %cst_5 = arith.constant 1.000000e+00 : f32
    %9 = vector.broadcast %cst_5 : f32 to vector<8x32xf32>
    %10 = arith.addf %9, %8 : vector<8x32xf32>
    %11 = arith.divf %9, %10 : vector<8x32xf32>
    %12 = vector.extract_strided_slice %5 {offsets = [0, 32], sizes = [8, 32], strides = [1, 1]} : vector<8x128xf32> to vector<8x32xf32>
    %13 = arith.negf %12 : vector<8x32xf32>
    %14 = math.exp %13 : vector<8x32xf32>
    %cst_6 = arith.constant 1.000000e+00 : f32
    %15 = vector.broadcast %cst_6 : f32 to vector<8x32xf32>
    %16 = arith.addf %15, %14 : vector<8x32xf32>
    %17 = arith.divf %15, %16 : vector<8x32xf32>
    %18 = vector.extract_strided_slice %5 {offsets = [0, 64], sizes = [8, 32], strides = [1, 1]} : vector<8x128xf32> to vector<8x32xf32>
    %c2 = arith.constant 2 : index
    %c0_7 = arith.constant 0 : index
    %19 = vector.load %arg3[%c2, %c0_7] : memref<8x128xf32, #tpu.memory_space<vmem>>, vector<1x32xf32>
    %20 = vector.broadcast %19 : vector<1x32xf32> to vector<8x32xf32>
    %21 = arith.mulf %11, %20 : vector<8x32xf32>
    %22 = arith.addf %18, %21 : vector<8x32xf32>
    %23 = math.tanh %22 : vector<8x32xf32>
    %cst_8 = arith.constant 1.000000e+00 : f32
    %24 = vector.broadcast %cst_8 : f32 to vector<8x32xf32>
    %25 = arith.subf %24, %17 : vector<8x32xf32>
    %26 = arith.mulf %25, %23 : vector<8x32xf32>
    %27 = arith.truncf %26 : vector<8x32xf32> to vector<8x32xbf16>
    %c128 = arith.constant 128 : index
    %c0_9 = arith.constant 0 : index
    %28 = vector.load %arg2[%c128, %c0_9] : memref<192x128xbf16, #tpu.memory_space<vmem>>, vector<32x128xbf16>
    %cst_10 = arith.constant dense<0.000000e+00> : vector<8x128xf32>
    %29 = tpu.matmul %27, %28, %cst_10 {dimension_numbers = #tpu.dot_dimension_numbers<[1], [0], [0], [1], [0, 0, 1, 1], [], []>} : vector<8x32xbf16>, vector<32x128xbf16>, vector<8x128xf32> -> vector<8x128xf32>
    %c1 = arith.constant 1 : index
    %c0_11 = arith.constant 0 : index
    %30 = vector.load %arg3[%c1, %c0_11] : memref<8x128xf32, #tpu.memory_space<vmem>>, vector<1x128xf32>
    %31 = vector.broadcast %30 : vector<1x128xf32> to vector<8x128xf32>
    %32 = arith.addf %29, %31 : vector<8x128xf32>
    %33 = vector.extract_strided_slice %32 {offsets = [0, 0], sizes = [8, 32], strides = [1, 1]} : vector<8x128xf32> to vector<8x32xf32>
    %34 = arith.negf %33 : vector<8x32xf32>
    %35 = math.exp %34 : vector<8x32xf32>
    %cst_12 = arith.constant 1.000000e+00 : f32
    %36 = vector.broadcast %cst_12 : f32 to vector<8x32xf32>
    %37 = arith.addf %36, %35 : vector<8x32xf32>
    %38 = arith.divf %36, %37 : vector<8x32xf32>
    %39 = vector.extract_strided_slice %32 {offsets = [0, 32], sizes = [8, 32], strides = [1, 1]} : vector<8x128xf32> to vector<8x32xf32>
    %40 = arith.negf %39 : vector<8x32xf32>
    %41 = math.exp %40 : vector<8x32xf32>
    %cst_13 = arith.constant 1.000000e+00 : f32
    %42 = vector.broadcast %cst_13 : f32 to vector<8x32xf32>
    %43 = arith.addf %42, %41 : vector<8x32xf32>
    %44 = arith.divf %42, %43 : vector<8x32xf32>
    %45 = vector.extract_strided_slice %32 {offsets = [0, 64], sizes = [8, 32], strides = [1, 1]} : vector<8x128xf32> to vector<8x32xf32>
    %c3 = arith.constant 3 : index
    %c0_14 = arith.constant 0 : index
    %46 = vector.load %arg3[%c3, %c0_14] : memref<8x128xf32, #tpu.memory_space<vmem>>, vector<1x32xf32>
    %47 = vector.broadcast %46 : vector<1x32xf32> to vector<8x32xf32>
    %48 = arith.mulf %38, %47 : vector<8x32xf32>
    %49 = arith.addf %45, %48 : vector<8x32xf32>
    %50 = math.tanh %49 : vector<8x32xf32>
    %cst_15 = arith.constant 1.000000e+00 : f32
    %51 = vector.broadcast %cst_15 : f32 to vector<8x32xf32>
    %52 = arith.subf %51, %44 : vector<8x32xf32>
    %53 = arith.mulf %52, %50 : vector<8x32xf32>
    %54 = arith.truncf %53 : vector<8x32xf32> to vector<8x32xbf16>
    %c160 = arith.constant 160 : index
    %c0_16 = arith.constant 0 : index
    %55 = vector.load %arg2[%c160, %c0_16] : memref<192x128xbf16, #tpu.memory_space<vmem>>, vector<32x128xbf16>
    %cst_17 = arith.constant dense<0.000000e+00> : vector<8x128xf32>
    %56 = tpu.matmul %54, %55, %cst_17 {dimension_numbers = #tpu.dot_dimension_numbers<[1], [0], [0], [1], [0, 0, 1, 1], [], []>} : vector<8x32xbf16>, vector<32x128xbf16>, vector<8x128xf32> -> vector<8x128xf32>
    %c4 = arith.constant 4 : index
    %c0_18 = arith.constant 0 : index
    %57 = vector.load %arg3[%c4, %c0_18] : memref<8x128xf32, #tpu.memory_space<vmem>>, vector<1x128xf32>
    %58 = vector.broadcast %57 : vector<1x128xf32> to vector<8x128xf32>
    %59 = arith.addf %56, %58 : vector<8x128xf32>
    %60 = arith.negf %59 : vector<8x128xf32>
    %61 = math.exp %60 : vector<8x128xf32>
    %cst_19 = arith.constant 1.000000e+00 : f32
    %62 = vector.broadcast %cst_19 : f32 to vector<8x128xf32>
    %63 = arith.addf %62, %61 : vector<8x128xf32>
    %64 = arith.divf %62, %63 : vector<8x128xf32>
    %c0_20 = arith.constant 0 : index
    %c0_21 = arith.constant 0 : index
    %65 = vector.load %arg4[%c0_20, %c0_21] : memref<8x128xf32, #tpu.memory_space<vmem>>, vector<8x128xf32>
    tpu.vector_store %arg4[%c0_20, %c0_21], %64 {strides = array<i32>} : memref<8x128xf32, #tpu.memory_space<vmem>>, vector<8x128xf32>,
    return
  }
  func.func @transform_0(%arg0: i32) -> (i32, i32) {
    %c0_i32 = arith.constant 0 : i32
    %c0_i32_0 = arith.constant 0 : i32
    return %arg0, %c0_i32 : i32, i32
  }
  func.func @transform_1(%arg0: i32) -> (i32, i32) {
    %c0_i32 = arith.constant 0 : i32
    %c0_i32_0 = arith.constant 0 : i32
    %c0_i32_1 = arith.constant 0 : i32
    return %c0_i32, %c0_i32_0 : i32, i32
  }
  func.func @transform_2(%arg0: i32) -> (i32, i32) {
    %c0_i32 = arith.constant 0 : i32
    %c0_i32_0 = arith.constant 0 : i32
    %c0_i32_1 = arith.constant 0 : i32
    return %c0_i32, %c0_i32_0 : i32, i32
  }
  func.func @transform_3(%arg0: i32) -> (i32, i32) {
    %c0_i32 = arith.constant 0 : i32
    %c0_i32_0 = arith.constant 0 : i32
    return %arg0, %c0_i32 : i32, i32
  }
}

</mosaic_0001>

<llo_original>
// kernel: tpu_custom_call.1
$region0: #{tpu_custom_call.1}
  #allocation0 [shape = 'u32[]', space=smem, size = 0x4, offset = 0x4, fixed_abs, tag = 'smem constant byte address 0x4 - core index']
  #allocation1 [shape = 'u32[144,128]{1,0:T(1,128)}', space=vmem, size = 0x12000, scoped, tag = 'internal scratch']
  %s0 = inlined_call_operand.hbm [shape: bf16[8,128], index: 0, kind: input, shape index: {}]
  %s1 = inlined_call_operand.hbm [shape: bf16[192,128], index: 1, kind: input, shape index: {}]
  %s2 = inlined_call_operand.hbm [shape: f32[8,128], index: 2, kind: input, shape index: {}]
  %s3 = inlined_call_operand.hbm [shape: f32[8,128], index: 3, kind: output, shape index: {}]
  %s4 = sld [smem:[#allocation0]]
  $region34: #{tpu_custom_call.1} parent=0
    _
  %s6 = ssub.s32 1, %s4
  %s7 = scalar_select 0, %s6, %s4
  $region1: #{tpu_custom_call.1} parent=0
    #allocation2 [shape = 'u8[2048]{0}', space=vmem, size = 0x800, scoped, tag = 'input window, operand 0, single buffered']
    #allocation3 [shape = 's32[1]{0}', space=sflag, size = 0x4, scoped, tag = 'scoped memory for tpu_custom_call.1']
    #allocation4 [shape = 's32[1]{0}', space=sflag, size = 0x4, scoped, tag = 'scoped memory for tpu_custom_call.1']
    #allocation5 [shape = 'u8[49152]{0}', space=vmem, size = 0xc000, scoped, tag = 'input window, operand 1, single buffered']
    #allocation6 [shape = 's32[1]{0}', space=sflag, size = 0x4, scoped, tag = 'scoped memory for tpu_custom_call.1']
    #allocation7 [shape = 'u8[4096]{0}', space=vmem, size = 0x1000, scoped, tag = 'input window, operand 2, single buffered']
    #allocation8 [shape = 'u8[4096]{0}', space=vmem, size = 0x1000, scoped, tag = 'output window, operand 0, single buffered']
    %8 = vsyncpa [#allocation3], 0
    %9 = vsyncpa [#allocation6], 0
    %10 = vsyncpa [#allocation4], 0
    // Predicated region
    $region2: #{tpu_custom_call.1} parent=1 // pred_check
      _
    $region3: #{tpu_custom_call.1} parent=1 // pred_check_branch
      %12 = sbr.rel (0) target = $region5
    $region4: #{tpu_custom_call.1} parent=1 // pred_region
      %s14 = ssub.s32 64, 64
      %15 = vsyncadd [#allocation3], %s14
      %s17 = sshll.u32 [#allocation2], 4
      %s18 = int_to_ptr.vmem [resolvable:$true] %s17
      %20 = dma.hbm_to_vmem [thread:$0]  %s0, 64, %s18, [#allocation3]
    $region5: #{tpu_custom_call.1} parent=1 // pred_fallthru
      _
    // Predicated region
    $region6: #{tpu_custom_call.1} parent=1 // pred_check
      _
    $region7: #{tpu_custom_call.1} parent=1 // pred_check_branch
      %22 = sbr.rel (0) target = $region9
    $region8: #{tpu_custom_call.1} parent=1 // pred_region
      %s24 = ssub.s32 1536, 1536
      %25 = vsyncadd [#allocation6], %s24
      %s26 = sshll.u32 [#allocation5], 4
      %s27 = int_to_ptr.vmem [resolvable:$true] %s26
      %32 = dma.hbm_to_vmem [thread:$0]  %s1, 1536, %s27, [#allocation6], 64, 64, 4
    $region9: #{tpu_custom_call.1} parent=1 // pred_fallthru
      _
    // Predicated region
    $region10: #{tpu_custom_call.1} parent=1 // pred_check
      _
    $region11: #{tpu_custom_call.1} parent=1 // pred_check_branch
      %34 = sbr.rel (0) target = $region13
    $region12: #{tpu_custom_call.1} parent=1 // pred_region
      %s36 = ssub.s32 128, 128
      %37 = vsyncadd [#allocation6], %s36
      %s39 = sshll.u32 [#allocation7], 4
      %s40 = int_to_ptr.vmem [resolvable:$true] %s39
      %42 = dma.hbm_to_vmem [thread:$0]  %s2, 128, %s40, [#allocation6]
    $region13: #{tpu_custom_call.1} parent=1 // pred_fallthru
      _
    // Predicated region
    $region14: #{tpu_custom_call.1} parent=1 // pred_check
      _
    $region15: #{tpu_custom_call.1} parent=1 // pred_check_branch
      %44 = sbr.rel (0) target = $region17
    $region16: #{tpu_custom_call.1} parent=1 // pred_region
      %45 = dma.done [#allocation3], 64
    $region17: #{tpu_custom_call.1} parent=1 // pred_fallthru
      _
    // Predicated region
    $region18: #{tpu_custom_call.1} parent=1 // pred_check
      _
    $region19: #{tpu_custom_call.1} parent=1 // pred_check_branch
      %47 = sbr.rel (0) target = $region21
    $region20: #{tpu_custom_call.1} parent=1 // pred_region
      %48 = dma.done [#allocation6], 1536
    $region21: #{tpu_custom_call.1} parent=1 // pred_fallthru
      _
    // Predicated region
    $region22: #{tpu_custom_call.1} parent=1 // pred_check
      _
    $region23: #{tpu_custom_call.1} parent=1 // pred_check_branch
      %50 = sbr.rel (0) target = $region25
    $region24: #{tpu_custom_call.1} parent=1 // pred_region
      %51 = dma.done [#allocation6], 128
    $region25: #{tpu_custom_call.1} parent=1 // pred_fallthru
      _
    %v53 = vld [vmem:[#allocation2] sm:$0xf]
    %v54 = vld [vmem:[#allocation5] sm:$0xf]
    %v55 = vld [vmem:[#allocation5 + $0x4] sm:$0xf]
    %v56 = vld [vmem:[#allocation5 + $0x8] sm:$0xf]
    %v57 = vld [vmem:[#allocation5 + $0xc] sm:$0xf]
    %v58 = vld [vmem:[#allocation5 + $0x10] sm:$0xf]
    %v59 = vld [vmem:[#allocation5 + $0x14] sm:$0xf]
    %v60 = vld [vmem:[#allocation5 + $0x18] sm:$0xf]
    %v61 = vld [vmem:[#allocation5 + $0x1c] sm:$0xf]
    %v62 = vld [vmem:[#allocation5 + $0x20] sm:$0xf]
    %v63 = vld [vmem:[#allocation5 + $0x24] sm:$0xf]
    %v64 = vld [vmem:[#allocation5 + $0x28] sm:$0xf]
    %v65 = vld [vmem:[#allocation5 + $0x2c] sm:$0xf]
    %v66 = vld [vmem:[#allocation5 + $0x30] sm:$0xf]
    %v67 = vld [vmem:[#allocation5 + $0x34] sm:$0xf]
    %v68 = vld [vmem:[#allocation5 + $0x38] sm:$0xf]
    %v69 = vld [vmem:[#allocation5 + $0x3c] sm:$0xf]
    %v70 = vld [vmem:[#allocation7] sm:$0x1]
    %v71 = vlaneseq
    %v72 = vshrl.u32 %v71, 7
    %v73 = vsub.s32 0, %v72
    %v74 = vrot.slane %v70, %v73
    %v91 = vunpack.c.l.b16 %v54
    %v92 = vunpack.c.l.b16 %v55
    %v93 = vunpack.c.l.b16 %v56
    %v94 = vunpack.c.l.b16 %v57
    %v95 = vunpack.c.l.b16 %v58
    %v96 = vunpack.c.l.b16 %v59
    %v97 = vunpack.c.l.b16 %v60
    %v98 = vunpack.c.l.b16 %v61
    %v99 = vunpack.c.l.b16 %v62
    %v100 = vunpack.c.l.b16 %v63
    %v101 = vunpack.c.l.b16 %v64
    %v102 = vunpack.c.l.b16 %v65
    %v103 = vunpack.c.l.b16 %v66
    %v104 = vunpack.c.l.b16 %v67
    %v105 = vunpack.c.l.b16 %v68
    %v106 = vunpack.c.l.b16 %v69
    %v107 = vpack.c.b16 %v92, %v91
    %v108 = vpack.c.b16 %v94, %v93
    %v109 = vpack.c.b16 %v96, %v95
    %v110 = vpack.c.b16 %v98, %v97
    %v111 = vpack.c.b16 %v100, %v99
    %v112 = vpack.c.b16 %v102, %v101
    %v113 = vpack.c.b16 %v104, %v103
    %v114 = vpack.c.b16 %v106, %v105
    %123 = vmatprep.subr.bf16.mxu0 0
    %124 = vmatpush1.bf16.msra.mxu0 %v107
    %125 = vmatprep.subr.bf16.mxu0 0
    %126 = vmatpush1.bf16.msra.mxu0 %v108
    %127 = vmatprep.subr.bf16.mxu0 0
    %128 = vmatpush1.bf16.msra.mxu0 %v109
    %129 = vmatprep.subr.bf16.mxu0 0
    %130 = vmatpush1.bf16.msra.mxu0 %v110
    %131 = vmatprep.subr.bf16.mxu0 0
    %132 = vmatpush1.bf16.msra.mxu0 %v111
    %133 = vmatprep.subr.bf16.mxu0 0
    %134 = vmatpush1.bf16.msra.mxu0 %v112
    %135 = vmatprep.subr.bf16.mxu0 0
    %136 = vmatpush1.bf16.msra.mxu0 %v113
    %137 = vmatprep.subr.bf16.mxu0 0
    %138 = vmatpush1.bf16.msra.mxu0 %v114
    %139 = vmatprep.subr.bf16.mxu0 0
    %140 = vmatpush1.bf16.msra.mxu0 0
    %141 = vmatprep.subr.bf16.mxu0 0
    %142 = vmatpush1.bf16.msra.mxu0 0
    %143 = vmatprep.subr.bf16.mxu0 0
    %144 = vmatpush1.bf16.msra.mxu0 0
    %145 = vmatprep.subr.bf16.mxu0 0
    %146 = vmatpush1.bf16.msra.mxu0 0
    %147 = vmatprep.subr.bf16.mxu0 0
    %148 = vmatpush1.bf16.msra.mxu0 0
    %149 = vmatprep.subr.bf16.mxu0 0
    %150 = vmatpush1.bf16.msra.mxu0 0
    %151 = vmatprep.subr.bf16.mxu0 0
    %152 = vmatpush1.bf16.msra.mxu0 0
    %153 = vmatprep.subr.bf16.mxu0 0
    %154 = vmatpush1.bf16.msra.mxu0 0
    %155 = vmatprep.mubr.bf16.mxu0 0
    %156 = vmatmul.mubr.bf16.gmra.mrb[0].mxu0 %v53
    %v157 = vpop.f32.mrb[0].mxu0
    %v158 = vadd.f32 %v74, %v157
    %v159 = vpop.f32.mrb[0].mxu0
    %v160 = vpop.f32.mrb[0].mxu0
    %v161 = vpop.f32.mrb[0].mxu0
    %162 = vdwg.mxu0
    %v163 = vxor.u32 %v158, 2147483648
    %v164 = vmul.f32 %v163, 1.442695
    %v165 = vpow.pop %v164
    %v166 = vadd.f32 %v165, 1.0
    %v167 = vrcp.pop %v166
    %v168 = vmul.f32 1.0, %v167
    %v169 = vld [vmem:[#allocation7 + $0x2] sm:$0x1]
    %v170 = vlaneseq
    %v171 = vshrl.u32 %v170, 7
    %v172 = vsub.s32 0, %v171
    %v173 = vrot.slane %v169, %v172
    %v174 = vmul.f32 %v168, %v173
    %176 = vrot.lane.b32.xlu0 %v174, 64
    %v177 = vpop.permute.xlu0 %176
    %v179 = vadd.f32 %v158, %v177
    %v180 = vtanh.pop %v179
    %v181 = vsub.f32 1.0, %v168
    %183 = vrot.lane.b32.xlu0 %v180, 96
    %v184 = vpop.permute.xlu0 %183
    %v186 = vmul.f32 %v181, %v184
    %v187 = vpack.c.bf16 %v186, %v186
    %v188 = vld [vmem:[#allocation5 + $0x40] sm:$0xf]
    %v189 = vld [vmem:[#allocation5 + $0x44] sm:$0xf]
    %v190 = vld [vmem:[#allocation5 + $0x48] sm:$0xf]
    %v191 = vld [vmem:[#allocation5 + $0x4c] sm:$0xf]
    %v192 = vld [vmem:[#allocation7 + $0x1] sm:$0x1]
    %v193 = vlaneseq
    %v194 = vshrl.u32 %v193, 7
    %v195 = vsub.s32 0, %v194
    %v196 = vrot.slane %v192, %v195
    %198 = vrot.lane.b32.xlu0 %v187, 96
    %v199 = vpop.permute.xlu0 %198
    %v204 = vunpack.c.l.b16 %v188
    %v205 = vunpack.c.l.b16 %v189
    %v206 = vunpack.c.l.b16 %v190
    %v207 = vunpack.c.l.b16 %v191
    %v208 = vpack.c.b16 %v205, %v204
    %v209 = vpack.c.b16 %v207, %v206
    %vm212 = vcmask 261120
    %v214 = vsel %vm212, %v199, 0
    %216 = vmatprep.subr.bf16.mxu0 0
    %217 = vmatpush1.bf16.msra.mxu0 %v208
    %218 = vmatprep.subr.bf16.mxu0 0
    %219 = vmatpush1.bf16.msra.mxu0 %v209
    %220 = vmatprep.subr.bf16.mxu0 0
    %221 = vmatpush1.bf16.msra.mxu0 0
    %222 = vmatprep.subr.bf16.mxu0 0
    %223 = vmatpush1.bf16.msra.mxu0 0
    %224 = vmatprep.subr.bf16.mxu0 0
    %225 = vmatpush1.bf16.msra.mxu0 0
    %226 = vmatprep.subr.bf16.mxu0 0
    %227 = vmatpush1.bf16.msra.mxu0 0
    %228 = vmatprep.subr.bf16.mxu0 0
    %229 = vmatpush1.bf16.msra.mxu0 0
    %230 = vmatprep.subr.bf16.mxu0 0
    %231 = vmatpush1.bf16.msra.mxu0 0
    %232 = vmatprep.subr.bf16.mxu0 0
    %233 = vmatpush1.bf16.msra.mxu0 0
    %234 = vmatprep.subr.bf16.mxu0 0
    %235 = vmatpush1.bf16.msra.mxu0 0
    %236 = vmatprep.subr.bf16.mxu0 0
    %237 = vmatpush1.bf16.msra.mxu0 0
    %238 = vmatprep.subr.bf16.mxu0 0
    %239 = vmatpush1.bf16.msra.mxu0 0
    %240 = vmatprep.subr.bf16.mxu0 0
    %241 = vmatpush1.bf16.msra.mxu0 0
    %242 = vmatprep.subr.bf16.mxu0 0
    %243 = vmatpush1.bf16.msra.mxu0 0
    %244 = vmatprep.subr.bf16.mxu0 0
    %245 = vmatpush1.bf16.msra.mxu0 0
    %246 = vmatprep.subr.bf16.mxu0 0
    %247 = vmatpush1.bf16.msra.mxu0 0
    %248 = vmatprep.mubr.bf16.mxu0 0
    %249 = vmatmul.mubr.bf16.gmra.mrb[0].mxu0 %v214
    %v250 = vpop.f32.mrb[0].mxu0
    %v251 = vadd.f32 %v196, %v250
    %v252 = vpop.f32.mrb[0].mxu0
    %v253 = vpop.f32.mrb[0].mxu0
    %v254 = vpop.f32.mrb[0].mxu0
    %255 = vdwg.mxu0
    %v256 = vxor.u32 %v251, 2147483648
    %v257 = vmul.f32 %v256, 1.442695
    %v258 = vpow.pop %v257
    %v259 = vadd.f32 %v258, 1.0
    %v260 = vrcp.pop %v259
    %v261 = vmul.f32 1.0, %v260
    %v262 = vld [vmem:[#allocation7 + $0x3] sm:$0x1]
    %v263 = vlaneseq
    %v264 = vshrl.u32 %v263, 7
    %v265 = vsub.s32 0, %v264
    %v266 = vrot.slane %v262, %v265
    %v267 = vmul.f32 %v261, %v266
    %269 = vrot.lane.b32.xlu0 %v267, 64
    %v270 = vpop.permute.xlu0 %269
    %v272 = vadd.f32 %v251, %v270
    %v273 = vtanh.pop %v272
    %v274 = vsub.f32 1.0, %v261
    %276 = vrot.lane.b32.xlu0 %v273, 96
    %v277 = vpop.permute.xlu0 %276
    %v279 = vmul.f32 %v274, %v277
    %v280 = vpack.c.bf16 %v279, %v279
    %v281 = vld [vmem:[#allocation5 + $0x50] sm:$0xf]
    %v282 = vld [vmem:[#allocation5 + $0x54] sm:$0xf]
    %v283 = vld [vmem:[#allocation5 + $0x58] sm:$0xf]
    %v284 = vld [vmem:[#allocation5 + $0x5c] sm:$0xf]
    %v285 = vld [vmem:[#allocation7 + $0x4] sm:$0x1]
    %v286 = vlaneseq
    %v287 = vshrl.u32 %v286, 7
    %v288 = vsub.s32 0, %v287
    %v289 = vrot.slane %v285, %v288
    %291 = vrot.lane.b32.xlu0 %v280, 96
    %v292 = vpop.permute.xlu0 %291
    %v297 = vunpack.c.l.b16 %v281
    %v298 = vunpack.c.l.b16 %v282
    %v299 = vunpack.c.l.b16 %v283
    %v300 = vunpack.c.l.b16 %v284
    %v301 = vpack.c.b16 %v298, %v297
    %v302 = vpack.c.b16 %v300, %v299
    %v306 = vsel %vm212, %v292, 0
    %308 = vmatprep.subr.bf16.mxu0 0
    %309 = vmatpush1.bf16.msra.mxu0 %v301
    %310 = vmatprep.subr.bf16.mxu0 0
    %311 = vmatpush1.bf16.msra.mxu0 %v302
    %312 = vmatprep.subr.bf16.mxu0 0
    %313 = vmatpush1.bf16.msra.mxu0 0
    %314 = vmatprep.subr.bf16.mxu0 0
    %315 = vmatpush1.bf16.msra.mxu0 0
    %316 = vmatprep.subr.bf16.mxu0 0
    %317 = vmatpush1.bf16.msra.mxu0 0
    %318 = vmatprep.subr.bf16.mxu0 0
    %319 = vmatpush1.bf16.msra.mxu0 0
    %320 = vmatprep.subr.bf16.mxu0 0
    %321 = vmatpush1.bf16.msra.mxu0 0
    %322 = vmatprep.subr.bf16.mxu0 0
    %323 = vmatpush1.bf16.msra.mxu0 0
    %324 = vmatprep.subr.bf16.mxu0 0
    %325 = vmatpush1.bf16.msra.mxu0 0
    %326 = vmatprep.subr.bf16.mxu0 0
    %327 = vmatpush1.bf16.msra.mxu0 0
    %328 = vmatprep.subr.bf16.mxu0 0
    %329 = vmatpush1.bf16.msra.mxu0 0
    %330 = vmatprep.subr.bf16.mxu0 0
    %331 = vmatpush1.bf16.msra.mxu0 0
    %332 = vmatprep.subr.bf16.mxu0 0
    %333 = vmatpush1.bf16.msra.mxu0 0
    %334 = vmatprep.subr.bf16.mxu0 0
    %335 = vmatpush1.bf16.msra.mxu0 0
    %336 = vmatprep.subr.bf16.mxu0 0
    %337 = vmatpush1.bf16.msra.mxu0 0
    %338 = vmatprep.subr.bf16.mxu0 0
    %339 = vmatpush1.bf16.msra.mxu0 0
    %340 = vmatprep.mubr.bf16.mxu0 0
    %341 = vmatmul.mubr.bf16.gmra.mrb[0].mxu0 %v306
    %v342 = vpop.f32.mrb[0].mxu0
    %v343 = vadd.f32 %v289, %v342
    %v344 = vpop.f32.mrb[0].mxu0
    %v345 = vpop.f32.mrb[0].mxu0
    %v346 = vpop.f32.mrb[0].mxu0
    %347 = vdwg.mxu0
    %v348 = vxor.u32 %v343, 2147483648
    %v349 = vmul.f32 %v348, 1.442695
    %v350 = vpow.pop %v349
    %v351 = vadd.f32 %v350, 1.0
    %v352 = vrcp.pop %v351
    %v353 = vmul.f32 1.0, %v352
    %354 = vst [vmem:[#allocation8] sm:$0xff] %v353
    // Predicated region
    $region26: #{tpu_custom_call.1} parent=1 // pred_check
      _
    $region27: #{tpu_custom_call.1} parent=1 // pred_check_branch
      %356 = sbr.rel (0) target = $region29
    $region28: #{tpu_custom_call.1} parent=1 // pred_region
      %s358 = ssub.s32 128, 128
      %359 = vsyncadd [#allocation4], %s358
      %s361 = sshll.u32 [#allocation8], 4
      %s362 = int_to_ptr.vmem [resolvable:$true] %s361
      %364 = dma.vmem_to_hbm [thread:$0]  %s362, 128, %s3, [#allocation4]
    $region29: #{tpu_custom_call.1} parent=1 // pred_fallthru
      _
    // Predicated region
    $region30: #{tpu_custom_call.1} parent=1 // pred_check
      _
    $region31: #{tpu_custom_call.1} parent=1 // pred_check_branch
      %366 = sbr.rel (0) target = $region33
    $region32: #{tpu_custom_call.1} parent=1 // pred_region
      %367 = dma.done [#allocation4], 128
    $region33: #{tpu_custom_call.1} parent=1 // pred_fallthru
      _
    %368 = vsyncpa [#allocation3], 1
    %369 = vsyncpa [#allocation6], 1
    %370 = vsyncpa [#allocation4], 1

</llo_original>
